<compile_context>
chip_gen: v6e
topology: v6e:2x2x1
jax: 0.10.0
libtpu: 0.0.40
codegen_flags: <defaults>
</compile_context>

<pallas_src>
import math
import functools

import jax
import jax.numpy as jnp
from jax.experimental import pallas as pl
from jax.experimental.pallas import tpu as pltpu


# ---------------------------------------------------------------------------
# Kernels
# ---------------------------------------------------------------------------

def _timesteps_kernel_select(t_ref, f_ref, o_ref, *, half_dim, flip_sin_to_cos):
    """General path (half_dim % 128 != 0, possibly odd num_channels).

    f_ref is the frequency row duplicated to the full output width
    ([freqs, freqs] + optional trailing 0 for odd channel counts), so a single
    contiguous full-width store covers the sin half, the cos half and the zero
    pad column (sin(t*0) == 0) with no concat/rotate.
    """
    emb = t_ref[...] * f_ref[...]                                  # (tile_n, out_dim) f32
    lane = jax.lax.broadcasted_iota(jnp.int32, emb.shape, 1)
    if flip_sin_to_cos:
        is_cos = lane < half_dim                                   # [cos | sin | (0)]
    else:
        is_cos = (lane >= half_dim) & (lane < 2 * half_dim)        # [sin | cos | (0)]
    o_ref[...] = jnp.where(is_cos, jnp.cos(emb), jnp.sin(emb))


def _timesteps_kernel_split(t_ref, f_ref, o_ref, *, half_dim, flip_sin_to_cos):
    """Aligned path (half_dim % 128 == 0): both slice stores land on 128-lane
    boundaries, and sin/cos each run over only half the width."""
    emb = t_ref[...] * f_ref[...]                                  # (tile_n, half_dim) f32
    s = jnp.sin(emb)
    c = jnp.cos(emb)
    if flip_sin_to_cos:
        o_ref[:, :half_dim] = c
        o_ref[:, half_dim:] = s
    else:
        o_ref[:, :half_dim] = s
        o_ref[:, half_dim:] = c


# ---------------------------------------------------------------------------
# Tiling policy
# ---------------------------------------------------------------------------

def _pick_row_tile(n, out_dim):
    """Byte-budgeted row tile.

    - <= ~4 MiB per output block (so <= ~8 MiB double-buffered: safe inside the
      32 MiB scoped-VMEM default even on v7x).
    - <= 1024 rows (HBM-roofline plateau; more rows buys nothing).
    - >= 2 grid steps once n >= 256 (v7x has 2 TensorCores; also lets the
      auto-pipeliner overlap writeback with sin/cos on v5e/v6e).
    - multiple of 8 rows; the ragged last block is handled by Pallas.
    """
    if n <= 8:
        return n
    row_bytes = max(out_dim, 1) * 4
    budget_rows = max(8, (4 << 20) // row_bytes)
    tile = min(1024, budget_rows, n)
    if n >= 256:
        tile = min(tile, pl.cdiv(n, 2))
    return max(8, (tile // 8) * 8)


# ---------------------------------------------------------------------------
# Wrapper (== Timesteps.forward)
# ---------------------------------------------------------------------------

def timesteps_forward(timesteps, num_channels, flip_sin_to_cos=False,
                      downscale_freq_shift=1.0, scale=1.0, max_period=10000,
                      small_n_xla_threshold=0):
    """Equivalent of Timesteps(num_channels, flip_sin_to_cos, downscale_freq_shift)(timesteps)."""
    assert timesteps.ndim == 1, "Timesteps should be a 1d-array"
    n = timesteps.shape[0]
    half_dim = num_channels // 2
    out_dim = num_channels  # 2*half_dim (even) or 2*half_dim + 1 zero-pad column (odd)

    # Frequency row, computed once with the same op ordering as the reference.
    # NOTE: (half_dim - downscale_freq_shift) == 0 gives inf/nan, matching PyTorch.
    exponent = -math.log(max_period) * jnp.arange(half_dim, dtype=jnp.float32)
    exponent = exponent / (half_dim - downscale_freq_shift)
    freqs = jnp.exp(exponent)
    if scale != 1.0:
        freqs = freqs * jnp.float32(scale)   # fold scale once (wrapper-side)

    if n <= small_n_xla_threshold:
        # Tiny-batch regime: pallas_call dispatch dwarfs the ~KiB of work; plain XLA
        # (or fusion into the consumer) is the right call here.
        emb = timesteps.astype(jnp.float32)[:, None] * freqs[None, :]
        s, c = jnp.sin(emb), jnp.cos(emb)
        emb = jnp.concatenate([c, s] if flip_sin_to_cos else [s, c], axis=-1)
        if num_channels % 2 == 1:
            emb = jnp.pad(emb, ((0, 0), (0, 1)))
        return emb

    t2d = timesteps.astype(jnp.float32).reshape(n, 1)
    aligned = (half_dim > 0) and (half_dim % 128 == 0) and (num_channels % 2 == 0)

    if aligned:
        f_row = freqs.reshape(1, half_dim)
        kernel = functools.partial(_timesteps_kernel_split,
                                   half_dim=half_dim, flip_sin_to_cos=flip_sin_to_cos)
    else:
        pieces = [freqs, freqs]
        if num_channels % 2 == 1:
            pieces.append(jnp.zeros((1,), jnp.float32))  # zero freq -> sin(0)=0 pad column
        f_row = jnp.concatenate(pieces).reshape(1, out_dim)
        kernel = functools.partial(_timesteps_kernel_select,
                                   half_dim=half_dim, flip_sin_to_cos=flip_sin_to_cos)

    f_width = f_row.shape[1]
    tile_n = _pick_row_tile(n, out_dim)
    grid = (pl.cdiv(n, tile_n),)

    return pl.pallas_call(
        kernel,
        out_shape=jax.ShapeDtypeStruct((n, out_dim), jnp.float32),
        grid=grid,
        in_specs=[
            pl.BlockSpec((tile_n, 1), lambda i: (i, 0)),
            pl.BlockSpec((1, f_width), lambda i: (0, 0)),
        ],
        out_specs=pl.BlockSpec((tile_n, out_dim), lambda i: (i, 0)),
        compiler_params=pltpu.CompilerParams(dimension_semantics=("parallel",)),
    )(t2d, f_row)


# ---------------------------------------------------------------------------
# Pure-JAX reference (mirrors the PyTorch code exactly) + checks
# ---------------------------------------------------------------------------

def _reference_timesteps(timesteps, num_channels, flip_sin_to_cos,
                         downscale_freq_shift, scale=1.0, max_period=10000):
    half_dim = num_channels // 2
    exponent = -math.log(max_period) * jnp.arange(half_dim, dtype=jnp.float32)
    exponent = exponent / (half_dim - downscale_freq_shift)
    emb = jnp.exp(exponent)
    emb = timesteps.astype(jnp.float32)[:, None] * emb[None, :]
    emb = scale * emb
    emb = jnp.concatenate([jnp.sin(emb), jnp.cos(emb)], axis=-1)
    if flip_sin_to_cos:
        emb = jnp.concatenate([emb[:, half_dim:], emb[:, :half_dim]], axis=-1)
    if num_channels % 2 == 1:
        emb = jnp.pad(emb, ((0, 0), (0, 1)))
    return emb


def _check(timesteps, num_channels, flip, shift, scale=1.0):
    out = timesteps_forward(timesteps, num_channels, flip_sin_to_cos=flip,
                            downscale_freq_shift=shift, scale=scale)
    out = jax.block_until_ready(out)
    ref = _reference_timesteps(timesteps, num_channels, flip, shift, scale=scale)
    assert out.shape == ref.shape, (out.shape, ref.shape)
    assert out.dtype == jnp.float32
    # Values are bounded by 1; remaining divergence is Mosaic-vs-XLA sin/cos ULPs plus
    # the scale-fold rounding order, both well under this tolerance for args <= ~1e3.
    err = float(jnp.max(jnp.abs(out - ref)))
    assert err < 2e-4, err


if __name__ == "__main__":
    key = jax.random.PRNGKey(0)

    # Typical module use: small batch of fractional timesteps, small channel count.
    batch = 8
    num_channels = 32
    timesteps = jax.random.uniform(key, (batch,), dtype=jnp.float32,
                                   minval=0.0, maxval=1000.0)
    _check(timesteps, num_channels, flip=True, shift=1.0)

    # Odd channel count (in-kernel zero pad column), no flip, non-unit scale.
    t_small = jax.random.uniform(jax.random.PRNGKey(2), (8,), dtype=jnp.float32,
                                 minval=0.0, maxval=100.0)
    _check(t_small, 31, flip=False, shift=0.0, scale=2.0)

    # Ragged grid: N not a multiple of the tile (exercises the cdiv grid / edge block).
    t_rag = jax.random.uniform(jax.random.PRNGKey(1), (300,), dtype=jnp.float32,
                               minval=0.0, maxval=1000.0)
    _check(t_rag, 64, flip=True, shift=1.0)

    # Aligned path: half_dim == 128 -> lane-aligned split stores, 2 grid steps.
    t_big = jax.random.uniform(jax.random.PRNGKey(3), (512,), dtype=jnp.float32,
                               minval=0.0, maxval=1000.0)
    _check(t_big, 256, flip=True, shift=1.0)

    print("KERNEL_OK")
</pallas_src>

<mosaic_0001>
module attributes {stable_mosaic.version = 11 : i64} {
  func.func @_timesteps_kernel_select(%arg0: i32, %arg1: memref<8x1xf32, #tpu.memory_space<vmem>>, %arg2: memref<1x32xf32, #tpu.memory_space<vmem>>, %arg3: memref<8x32xf32, #tpu.memory_space<vmem>>) attributes {dimension_semantics = [#tpu.dimension_semantics<parallel>], iteration_bounds = array<i64: 1>, scalar_prefetch = 0 : i64, scratch_operands = 0 : i64, tpu.core_type = #tpu.core_type<tc>, window_params = [{transform_indices = @transform_0, window_bounds = array<i64: 8, 1>}, {pipeline_mode = #tpu.pipeline_mode<synchronous>, transform_indices = @transform_1, window_bounds = array<i64: 1, 32>}, {transform_indices = @transform_2, window_bounds = array<i64: 8, 32>}]} {
    %c0 = arith.constant 0 : index
    %c0_0 = arith.constant 0 : index
    %0 = vector.load %arg1[%c0, %c0_0] : memref<8x1xf32, #tpu.memory_space<vmem>>, vector<8x1xf32>
    %c0_1 = arith.constant 0 : index
    %c0_2 = arith.constant 0 : index
    %1 = vector.load %arg2[%c0_1, %c0_2] : memref<1x32xf32, #tpu.memory_space<vmem>>, vector<1x32xf32>
    %2 = vector.broadcast %0 : vector<8x1xf32> to vector<8x32xf32>
    %3 = vector.broadcast %1 : vector<1x32xf32> to vector<8x32xf32>
    %4 = arith.mulf %2, %3 : vector<8x32xf32>
    %5 = tpu.iota {dimensions = array<i32: 1>} : vector<8x32xi32>
    %c16_i32 = arith.constant 16 : i32
    %6 = vector.broadcast %c16_i32 : i32 to vector<8x32xi32>
    %7 = arith.cmpi slt, %5, %6 : vector<8x32xi32>
    %8 = math.cos %4 : vector<8x32xf32>
    %9 = math.sin %4 : vector<8x32xf32>
    %10 = arith.select %7, %8, %9 : vector<8x32xi1>, vector<8x32xf32>
    %c0_3 = arith.constant 0 : index
    %c0_4 = arith.constant 0 : index
    %11 = vector.load %arg3[%c0_3, %c0_4] : memref<8x32xf32, #tpu.memory_space<vmem>>, vector<8x32xf32>
    tpu.vector_store %arg3[%c0_3, %c0_4], %10 {strides = array<i32>} : memref<8x32xf32, #tpu.memory_space<vmem>>, vector<8x32xf32>,
    return
  }
  func.func @transform_0(%arg0: i32) -> (i32, i32) {
    %c0_i32 = arith.constant 0 : i32
    %c0_i32_0 = arith.constant 0 : i32
    return %arg0, %c0_i32 : i32, i32
  }
  func.func @transform_1(%arg0: i32) -> (i32, i32) {
    %c0_i32 = arith.constant 0 : i32
    %c0_i32_0 = arith.constant 0 : i32
    %c0_i32_1 = arith.constant 0 : i32
    return %c0_i32, %c0_i32_0 : i32, i32
  }
  func.func @transform_2(%arg0: i32) -> (i32, i32) {
    %c0_i32 = arith.constant 0 : i32
    %c0_i32_0 = arith.constant 0 : i32
    return %arg0, %c0_i32 : i32, i32
  }
}

</mosaic_0001>

<llo_original>
// kernel: tpu_custom_call.1
$region0: #{tpu_custom_call.1}
  #allocation0 [shape = 'u32[]', space=smem, size = 0x4, offset = 0x4, fixed_abs, tag = 'smem constant byte address 0x4 - core index']
  #allocation1 [shape = 'u32[144,128]{1,0:T(1,128)}', space=vmem, size = 0x12000, scoped, tag = 'internal scratch']
  %s0 = inlined_call_operand.vmem [shape: f32[8,1], index: 0, kind: input, shape index: {}]
  %s1 = inlined_call_operand.vmem [shape: f32[1,32], index: 1, kind: input, shape index: {}]
  %s2 = inlined_call_operand.hbm [shape: f32[8,32], index: 2, kind: output, shape index: {}]
  %s3 = sld [smem:[#allocation0]]
  $region18: #{tpu_custom_call.1} parent=0
    _
  %s5 = ssub.s32 1, %s3
  %s6 = scalar_select 0, %s5, %s3
  $region1: #{tpu_custom_call.1} parent=0
    #allocation2 [shape = 'u8[4096]{0}', space=vmem, size = 0x1000, scoped, tag = 'output window, operand 0, single buffered']
    #allocation3 [shape = 's32[1]{0}', space=sflag, size = 0x4, scoped, tag = 'scoped memory for tpu_custom_call.1']
    %7 = vsyncpa [#allocation3], 0
    // Predicated region
    $region2: #{tpu_custom_call.1} parent=1 // pred_check
      _
    $region3: #{tpu_custom_call.1} parent=1 // pred_check_branch
      %9 = sbr.rel (0) target = $region5
    $region4: #{tpu_custom_call.1} parent=1 // pred_region
      _
    $region5: #{tpu_custom_call.1} parent=1 // pred_fallthru
      _
    // Predicated region
    $region6: #{tpu_custom_call.1} parent=1 // pred_check
      _
    $region7: #{tpu_custom_call.1} parent=1 // pred_check_branch
      %11 = sbr.rel (0) target = $region9
    $region8: #{tpu_custom_call.1} parent=1 // pred_region
      _
    $region9: #{tpu_custom_call.1} parent=1 // pred_fallthru
      _
    %v12 = vld [vmem:[%s0] sm:$0xff]
    %v13 = vld [vmem:[%s1] sm:$0x1]
    %15 = vset.pattern.permute.xlu0 0
    %16 = vperm.xlu0 %15, %v12
    %v17 = vpop.permute.xlu0 %16
    %v20 = vlaneseq
    %v21 = vshrl.u32 %v20, 7
    %v22 = vsub.s32 0, %v21
    %v23 = vrot.slane %v13, %v22
    %v25 = vmul.f32 %v17, %v23
    %v26 = vlaneseq
    %v27 = vand.u32 %v26, 127
    %vm28 = vcmp.lt.s32.totalorder %v27, 16
    %v29 = vand.u32 2147483647, %v25
    %vm30 = vcmp.le.f32.partialorder %v29, 0.7853982
    %vm31 = vcmp.lt.s32.totalorder %v25, 0
    %v32 = vand.u32 %v25, 2139095040
    %v33 = vshrl.u32 %v32, 23
    %v34 = vsub.s32 %v33, 127
    %v35 = vand.u32 2147483647, %v25
    %v36 = vand.u32 %v35, 8388607
    %v37 = vor.u32 %v36, 8388608
    %v38 = vsub.s32 0, %v37
    %v39 = vadd.s32 %v34, 1
    %vm40 = vcmp.gt.s32.totalorder %v39, 0
    %v41 = vsel %vm40, %v39, 0
    %v42 = vshrl.u32 %v41, 5
    %v43 = vand.u32 %v41, 31
    %v44 = vsub.s32 32, %v43
    %v45 = vshrl.u32 683565275, %v44
    %v46 = vshll.u32 683565275, %v43
    %v47 = vshrl.u32 2475754826, %v44
    %v48 = vor.u32 %v46, %v47
    %v49 = vshll.u32 2475754826, %v43
    %v50 = vshrl.u32 2131351028, %v44
    %v51 = vor.u32 %v49, %v50
    %v52 = vshll.u32 2131351028, %v43
    %v53 = vshrl.u32 2102212464, %v44
    %v54 = vor.u32 %v52, %v53
    %v55 = vshll.u32 2102212464, %v43
    %v56 = vshrl.u32 920167782, %v44
    %v57 = vor.u32 %v55, %v56
    %v58 = vshll.u32 920167782, %v43
    %v59 = vshrl.u32 1326507024, %v44
    %v60 = vor.u32 %v58, %v59
    %vm61 = vcmp.lt.s32.totalorder %v42, 1
    %vm62 = vcmp.lt.s32.totalorder %v42, 2
    %vm63 = vcmp.lt.s32.totalorder %v42, 3
    %vm64 = vcmp.lt.s32.totalorder %v42, 4
    %v65 = vsel %vm61, %v45, %v48
    %v66 = vsel %vm64, %v54, 2102212464
    %v67 = vsel %vm63, %v51, %v66
    %v68 = vsel %vm62, %v65, %v67
    %v69 = vsel %vm61, %v48, %v51
    %v70 = vsel %vm64, %v57, 920167782
    %v71 = vsel %vm63, %v54, %v70
    %v72 = vsel %vm62, %v69, %v71
    %v73 = vsel %vm61, %v51, %v54
    %v74 = vsel %vm64, %v60, 1326507024
    %v75 = vsel %vm63, %v57, %v74
    %v76 = vsel %vm62, %v73, %v75
    %v77 = vshll.u32 %v37, 8
    %v78 = vmul.u32.u64.compose %v77, %v76
    %v79 = vextract.low.u32 %v78
    %v80 = vextract.high.u32 %v78
    %v81 = vmul.u32.u64.compose %v77, %v72
    %v82 = vextract.low.u32 %v81
    %v83 = vextract.high.u32 %v81
    %v84 = vmul.u32 %v77, %v68
    %v85 = vadd.s32 %v80, %v82
    %vm86 = vc.u32 %v80, %v82
    %v87 = vadd.s32 %v83, 1
    %v88 = vsel %vm86, %v87, %v83
    %v89 = vadd.s32 %v84, %v88
    %v90 = vadd.s32 %v89, 536870912
    %v91 = vshrl.u32 %v90, 30
    %v92 = vshll.u32 %v91, 30
    %v93 = vsub.s32 %v89, %v92
    %vm94 = vcmp.lt.s32.totalorder %v93, 0
    %v95 = vsub.s32 0, %v93
    %v96 = vsel %vm94, %v95, %v93
    %v97 = vclz %v96
    %v98 = vsub.s32 %v97, 2
    %vm99 = vcmp.gt.s32.totalorder 0, %v98
    %v100 = vsel %vm99, 0, %v98
    %v101 = vsub.s32 32, %v100
    %v102 = vshll.u32 %v93, %v100
    %v103 = vshrl.u32 %v85, %v101
    %v104 = vor.u32 %v102, %v103
    %v105 = vsub.s32 4294967266, %v100
    %v106 = vadd.s32 %v105, 127
    %v107 = vshll.u32 %v106, 23
    %v108 = vor.u32 4788187, %v107
    %v109 = vand.u32 2147483647, %v108
    %v111 = vcvt.s32.f32 %v104
    %v112 = vmul.f32 %v111, %v109
    %v113 = vxor.u32 %v112, 2147483648
    %v114 = vsel %vm31, %v113, %v112
    %v115 = vsub.s32 4, %v91
    %v116 = vsel %vm31, %v115, %v91
    %v117 = vsel %vm30, %v25, %v114
    %v118 = vsel %vm30, 0, %v116
    %v119 = vcosq.f32.pop %v117
    %v120 = vsinq.f32.pop %v117
    %vm121 = vweird.f32 %v25
    %v122 = vand.u32 %v118, 3
    %vm123 = vcmp.lt.s32.totalorder %v122, 2
    %vm124 = vcmp.eq.s32.totalorder %v122, 0
    %v125 = vxor.u32 %v120, 2147483648
    %v126 = vsel %vm124, %v119, %v125
    %vm127 = vcmp.eq.s32.totalorder %v122, 2
    %v128 = vxor.u32 %v119, 2147483648
    %v129 = vsel %vm127, %v128, %v120
    %v130 = vsel %vm123, %v126, %v129
    %v131 = vsel %vm121, nan, %v130
    %v132 = vand.u32 2147483647, %v25
    %vm133 = vcmp.le.f32.partialorder %v132, 0.7853982
    %vm134 = vcmp.lt.s32.totalorder %v25, 0
    %v135 = vand.u32 %v25, 2139095040
    %v136 = vshrl.u32 %v135, 23
    %v137 = vsub.s32 %v136, 127
    %v138 = vand.u32 2147483647, %v25
    %v139 = vand.u32 %v138, 8388607
    %v140 = vor.u32 %v139, 8388608
    %v141 = vsub.s32 0, %v140
    %v142 = vadd.s32 %v137, 1
    %vm143 = vcmp.gt.s32.totalorder %v142, 0
    %v144 = vsel %vm143, %v142, 0
    %v145 = vshrl.u32 %v144, 5
    %v146 = vand.u32 %v144, 31
    %v147 = vsub.s32 32, %v146
    %v148 = vshrl.u32 683565275, %v147
    %v149 = vshll.u32 683565275, %v146
    %v150 = vshrl.u32 2475754826, %v147
    %v151 = vor.u32 %v149, %v150
    %v152 = vshll.u32 2475754826, %v146
    %v153 = vshrl.u32 2131351028, %v147
    %v154 = vor.u32 %v152, %v153
    %v155 = vshll.u32 2131351028, %v146
    %v156 = vshrl.u32 2102212464, %v147
    %v157 = vor.u32 %v155, %v156
    %v158 = vshll.u32 2102212464, %v146
    %v159 = vshrl.u32 920167782, %v147
    %v160 = vor.u32 %v158, %v159
    %v161 = vshll.u32 920167782, %v146
    %v162 = vshrl.u32 1326507024, %v147
    %v163 = vor.u32 %v161, %v162
    %vm164 = vcmp.lt.s32.totalorder %v145, 1
    %vm165 = vcmp.lt.s32.totalorder %v145, 2
    %vm166 = vcmp.lt.s32.totalorder %v145, 3
    %vm167 = vcmp.lt.s32.totalorder %v145, 4
    %v168 = vsel %vm164, %v148, %v151
    %v169 = vsel %vm167, %v157, 2102212464
    %v170 = vsel %vm166, %v154, %v169
    %v171 = vsel %vm165, %v168, %v170
    %v172 = vsel %vm164, %v151, %v154
    %v173 = vsel %vm167, %v160, 920167782
    %v174 = vsel %vm166, %v157, %v173
    %v175 = vsel %vm165, %v172, %v174
    %v176 = vsel %vm164, %v154, %v157
    %v177 = vsel %vm167, %v163, 1326507024
    %v178 = vsel %vm166, %v160, %v177
    %v179 = vsel %vm165, %v176, %v178
    %v180 = vshll.u32 %v140, 8
    %v181 = vmul.u32.u64.compose %v180, %v179
    %v182 = vextract.low.u32 %v181
    %v183 = vextract.high.u32 %v181
    %v184 = vmul.u32.u64.compose %v180, %v175
    %v185 = vextract.low.u32 %v184
    %v186 = vextract.high.u32 %v184
    %v187 = vmul.u32 %v180, %v171
    %v188 = vadd.s32 %v183, %v185
    %vm189 = vc.u32 %v183, %v185
    %v190 = vadd.s32 %v186, 1
    %v191 = vsel %vm189, %v190, %v186
    %v192 = vadd.s32 %v187, %v191
    %v193 = vadd.s32 %v192, 536870912
    %v194 = vshrl.u32 %v193, 30
    %v195 = vshll.u32 %v194, 30
    %v196 = vsub.s32 %v192, %v195
    %vm197 = vcmp.lt.s32.totalorder %v196, 0
    %v198 = vsub.s32 0, %v196
    %v199 = vsel %vm197, %v198, %v196
    %v200 = vclz %v199
    %v201 = vsub.s32 %v200, 2
    %vm202 = vcmp.gt.s32.totalorder 0, %v201
    %v203 = vsel %vm202, 0, %v201
    %v204 = vsub.s32 32, %v203
    %v205 = vshll.u32 %v196, %v203
    %v206 = vshrl.u32 %v188, %v204
    %v207 = vor.u32 %v205, %v206
    %v208 = vsub.s32 4294967266, %v203
    %v209 = vadd.s32 %v208, 127
    %v210 = vshll.u32 %v209, 23
    %v211 = vor.u32 4788187, %v210
    %v212 = vand.u32 2147483647, %v211
    %v214 = vcvt.s32.f32 %v207
    %v215 = vmul.f32 %v214, %v212
    %v216 = vxor.u32 %v215, 2147483648
    %v217 = vsel %vm134, %v216, %v215
    %v218 = vsub.s32 4, %v194
    %v219 = vsel %vm134, %v218, %v194
    %v220 = vsel %vm133, %v25, %v217
    %v221 = vsel %vm133, 0, %v219
    %v222 = vcosq.f32.pop %v220
    %v223 = vsinq.f32.pop %v220
    %vm224 = vweird.f32 %v25
    %v225 = vadd.s32 %v221, 3
    %v226 = vand.u32 %v225, 3
    %vm227 = vcmp.lt.s32.totalorder %v226, 2
    %vm228 = vcmp.eq.s32.totalorder %v226, 0
    %v229 = vxor.u32 %v223, 2147483648
    %v230 = vsel %vm228, %v222, %v229
    %vm231 = vcmp.eq.s32.totalorder %v226, 2
    %v232 = vxor.u32 %v222, 2147483648
    %v233 = vsel %vm231, %v232, %v223
    %v234 = vsel %vm227, %v230, %v233
    %v235 = vsel %vm224, nan, %v234
    %v236 = vsel %vm28, %v131, %v235
    %vm237 = vcmask 261120
    %238 = vst.msk [vmem:[#allocation2] sm:$0xff] %vm237, %v236
    // Predicated region
    $region10: #{tpu_custom_call.1} parent=1 // pred_check
      _
    $region11: #{tpu_custom_call.1} parent=1 // pred_check_branch
      %240 = sbr.rel (0) target = $region13
    $region12: #{tpu_custom_call.1} parent=1 // pred_region
      %s242 = ssub.s32 128, 128
      %243 = vsyncadd [#allocation3], %s242
      %s245 = sshll.u32 [#allocation2], 4
      %s246 = int_to_ptr.vmem [resolvable:$true] %s245
      %248 = dma.vmem_to_hbm [thread:$0]  %s246, 128, %s2, [#allocation3]
    $region13: #{tpu_custom_call.1} parent=1 // pred_fallthru
      _
    // Predicated region
    $region14: #{tpu_custom_call.1} parent=1 // pred_check
      _
    $region15: #{tpu_custom_call.1} parent=1 // pred_check_branch
      %250 = sbr.rel (0) target = $region17
    $region16: #{tpu_custom_call.1} parent=1 // pred_region
      %251 = dma.done [#allocation3], 128
    $region17: #{tpu_custom_call.1} parent=1 // pred_fallthru
      _
    %252 = vsyncpa [#allocation3], 1

</llo_original>
